<compile_context>
chip_gen: v6e
topology: v6e:2x2x1
jax: 0.10.0
libtpu: 0.0.40
codegen_flags: <defaults>
</compile_context>

<pallas_src>
import jax
import jax.numpy as jnp
from jax import lax
from jax.experimental import pallas as pl
from jax.experimental.pallas import tpu as pltpu

MASK_VALUE = -1000000000.0


# ----------------------------------------------------------------------------
# Helpers
# ----------------------------------------------------------------------------
def _largest_divisor_leq(n, k):
    k = max(1, min(n, k))
    while n % k:
        k -= 1
    return k


def _pick_seq_tile(s, block):
    """Largest divisor of s that is <= block and (multiple of 8 or == s)."""
    t = _largest_divisor_leq(s, block)
    if t != s and t % 8 != 0:
        best = 0
        d = 8
        while d <= min(s, block):
            if s % d == 0:
                best = d
            d += 8
        t = best if best else s
    return t


def _pick_head_group(n_heads, d_k, d_model):
    """Heads per grid step so the ctx/q blocks are lane-dense (~128 lanes)."""
    target = max(1, 128 // d_k) if d_k < 128 else 1
    hsub = _largest_divisor_leq(n_heads, target)
    if (hsub * d_k) % 128 != 0 and hsub * d_k != d_model:
        hsub = n_heads          # fall back: one group spanning the full feature dim
    return hsub


def _vmem_cap_bytes():
    try:
        cap = getattr(pltpu.get_tpu_info(), "vmem_capacity_bytes", None)
        if cap:
            return int(cap)
    except Exception:
        pass
    return 128 << 20            # v5e / v6e default; v7x caught by the query above


def _vmem_limit(per_step_bytes):
    cap = _vmem_cap_bytes()
    lim = 2 * int(per_step_bytes) + (8 << 20)       # double-buffering + headroom
    return int(min(max(lim, 16 << 20), (cap * 3) // 4))


# ----------------------------------------------------------------------------
# Projection kernels
# ----------------------------------------------------------------------------
def _linear_kernel(x_ref, w_ref, b_ref, o_ref):
    y = jnp.dot(x_ref[...], w_ref[...], preferred_element_type=jnp.float32)
    o_ref[...] = (y + b_ref[...].astype(jnp.float32)).astype(o_ref.dtype)


def pallas_linear(x2d, w, b, *, block_rows=512, block_cols=512):
    """Tiled, pipelined y = x @ w + b.  x2d: (M, D_in), w: (D_in, D_out)."""
    M, d_in = x2d.shape
    d_out = w.shape[1]
    tm = min(block_rows, M)
    tn = min(block_cols, d_out)

    per_step = (tm * d_in + tm * tn) * x2d.dtype.itemsize \
        + (d_in * tn + tn) * w.dtype.itemsize + tm * tn * 4

    return pl.pallas_call(
        _linear_kernel,
        out_shape=jax.ShapeDtypeStruct((M, d_out), x2d.dtype),
        grid=(pl.cdiv(M, tm), pl.cdiv(d_out, tn)),
        in_specs=[
            pl.BlockSpec((tm, d_in), lambda i, j: (i, 0)),
            pl.BlockSpec((d_in, tn), lambda i, j: (0, j)),
            pl.BlockSpec((1, tn), lambda i, j: (0, j)),
        ],
        out_specs=pl.BlockSpec((tm, tn), lambda i, j: (i, j)),
        compiler_params=pltpu.CompilerParams(
            dimension_semantics=("parallel", "parallel"),
            vmem_limit_bytes=_vmem_limit(per_step),
        ),
    )(x2d, w, b.reshape(1, d_out))


def _qkv_linear_kernel(x_ref, wq_ref, wk_ref, wv_ref, bq_ref, bk_ref, bv_ref,
                       q_ref, k_ref, v_ref):
    x = x_ref[...]
    for w_ref, b_ref, o_ref in ((wq_ref, bq_ref, q_ref),
                                (wk_ref, bk_ref, k_ref),
                                (wv_ref, bv_ref, v_ref)):
        y = jnp.dot(x, w_ref[...], preferred_element_type=jnp.float32)
        o_ref[...] = (y + b_ref[...].astype(jnp.float32)).astype(o_ref.dtype)


def pallas_qkv_linear(x2d, wq, wk, wv, bq, bk, bv, *, block_rows=512, block_cols=512):
    """Fused self-attention QKV projection: activation read once, three outputs."""
    M, d_in = x2d.shape
    d_out = wq.shape[1]
    tm = min(block_rows, M)
    tn = min(block_cols, d_out)

    w_spec = pl.BlockSpec((d_in, tn), lambda i, j: (0, j))
    b_spec = pl.BlockSpec((1, tn), lambda i, j: (0, j))
    o_spec = pl.BlockSpec((tm, tn), lambda i, j: (i, j))

    per_step = tm * d_in * x2d.dtype.itemsize \
        + 3 * (d_in * tn + tn) * wq.dtype.itemsize \
        + 3 * tm * tn * (x2d.dtype.itemsize + 4)

    return pl.pallas_call(
        _qkv_linear_kernel,
        out_shape=tuple(jax.ShapeDtypeStruct((M, d_out), x2d.dtype) for _ in range(3)),
        grid=(pl.cdiv(M, tm), pl.cdiv(d_out, tn)),
        in_specs=[pl.BlockSpec((tm, d_in), lambda i, j: (i, 0)),
                  w_spec, w_spec, w_spec, b_spec, b_spec, b_spec],
        out_specs=(o_spec, o_spec, o_spec),
        compiler_params=pltpu.CompilerParams(
            dimension_semantics=("parallel", "parallel"),
            vmem_limit_bytes=_vmem_limit(per_step),
        ),
    )(x2d, wq, wk, wv, bq.reshape(1, -1), bk.reshape(1, -1), bv.reshape(1, -1))


# ----------------------------------------------------------------------------
# Attention kernels
# ----------------------------------------------------------------------------
def _make_flash_attn_kernel(hsub, d_k, has_mask, bias_per_head):
    """Flash-style attention: online softmax over the KV grid axis."""
    scale = 1.0 / float(d_k) ** 0.5

    def kernel(*refs):
        i = 0
        q_ref = refs[i]; i += 1
        k_ref = refs[i]; i += 1
        v_ref = refs[i]; i += 1
        bias_ref = None
        if has_mask:
            bias_ref = refs[i]; i += 1
        o_ref = refs[i]; i += 1
        m_sc = refs[i]; i += 1
        l_sc = refs[i]; i += 1
        acc_sc = refs[i]; i += 1

        kv_idx = pl.program_id(3)

        @pl.when(kv_idx == 0)
        def _init():
            m_sc[...] = jnp.full_like(m_sc, -jnp.inf)
            l_sc[...] = jnp.zeros_like(l_sc)
            acc_sc[...] = jnp.zeros_like(acc_sc)

        # Fold 1/sqrt(d_k) into q (tq*hd elements instead of tq*Sk scores).
        q_all = q_ref[0] * scale          # (tq, hsub*d_k)
        k_all = k_ref[0]                  # (tkv, hsub*d_k)
        v_all = v_ref[0]                  # (tkv, hsub*d_k)
        bias_all = bias_ref[0] if has_mask else None   # (bh, bq, bk)

        for hh in range(hsub):
            cs = slice(hh * d_k, (hh + 1) * d_k)
            qh = q_all[:, cs]
            kh = k_all[:, cs]
            vh = v_all[:, cs]
            # q @ k^T: contract last dims, no materialized transpose.
            s = lax.dot_general(qh, kh, (((1,), (1,)), ((), ())),
                                preferred_element_type=jnp.float32)   # (tq, tkv)
            if has_mask:
                bsel = bias_all[hh] if bias_per_head else bias_all[0]
                s = s + bsel              # additive bias: 1 VPU add (no cmp+select)

            m_prev = m_sc[:, hh:hh + 1]
            m_new = jnp.maximum(m_prev, jnp.max(s, axis=-1, keepdims=True))
            alpha = jnp.exp(m_prev - m_new)
            p = jnp.exp(s - m_new)
            l_sc[:, hh:hh + 1] = alpha * l_sc[:, hh:hh + 1] \
                + jnp.sum(p, axis=-1, keepdims=True)
            acc_sc[:, cs] = alpha * acc_sc[:, cs] + jnp.dot(
                p.astype(vh.dtype), vh, preferred_element_type=jnp.float32)
            m_sc[:, hh:hh + 1] = m_new

        @pl.when(kv_idx == pl.num_programs(3) - 1)
        def _finalize():
            inv = pl.reciprocal(l_sc[...], approx=True)     # EUP slot, ~free
            acc = acc_sc[...]
            parts = [acc[:, hh * d_k:(hh + 1) * d_k] * inv[:, hh:hh + 1]
                     for hh in range(hsub)]
            out = parts[0] if hsub == 1 else jnp.concatenate(parts, axis=-1)
            o_ref[0] = out.astype(o_ref.dtype)              # lane-dense store

    return kernel


def _make_scores_attn_kernel(hsub, d_k, has_mask, bias_per_head):
    """Non-flash path: K/V resident over the query axis, writes softmax probs."""
    scale = 1.0 / float(d_k) ** 0.5

    def kernel(*refs):
        i = 0
        q_ref = refs[i]; i += 1
        k_ref = refs[i]; i += 1
        v_ref = refs[i]; i += 1
        bias_ref = None
        if has_mask:
            bias_ref = refs[i]; i += 1
        o_ref = refs[i]; i += 1
        p_ref = refs[i]; i += 1

        q_all = q_ref[0] * scale
        k_all = k_ref[0]
        v_all = v_ref[0]
        bias_all = bias_ref[0] if has_mask else None

        ctx_parts = []
        p_parts = []
        for hh in range(hsub):
            cs = slice(hh * d_k, (hh + 1) * d_k)
            qh = q_all[:, cs]
            kh = k_all[:, cs]
            vh = v_all[:, cs]
            s = lax.dot_general(qh, kh, (((1,), (1,)), ((), ())),
                                preferred_element_type=jnp.float32)   # (tq, Sk)
            if has_mask:
                bsel = bias_all[hh] if bias_per_head else bias_all[0]
                s = s + bsel
            m = jnp.max(s, axis=-1, keepdims=True)
            e = jnp.exp(s - m)
            l = jnp.sum(e, axis=-1, keepdims=True)
            p = e * pl.reciprocal(l, approx=True)
            p_parts.append(p)
            ctx_parts.append(jnp.dot(p.astype(vh.dtype), vh,
                                     preferred_element_type=jnp.float32))

        ctx = ctx_parts[0] if hsub == 1 else jnp.concatenate(ctx_parts, axis=-1)
        o_ref[0] = ctx.astype(o_ref.dtype)
        ps = p_parts[0][None] if hsub == 1 else jnp.stack(p_parts, axis=0)
        p_ref[0] = ps.astype(p_ref.dtype)

    return kernel


def pallas_attention(q, k, v, mask=None, *, n_heads, store_scores=False,
                     block_q=256, block_kv=512, scores_dtype=None):
    """Scaled dot-product attention over head-chunked (B, S, D) activations.

    Heads are the contiguous d_k column chunks of D (PyTorch layout) -- no
    (B,H,S,d_k) transposes are needed.  Returns (ctx (B, Sq, D), scores or None).
    """
    B, Sq, D = q.shape
    Sk = k.shape[1]
    assert D % n_heads == 0
    d_k = D // n_heads
    hsub = _pick_head_group(n_heads, d_k, D)
    n_hg = n_heads // hsub
    hd = hsub * d_k
    tq = _pick_seq_tile(Sq, block_q)
    isz = q.dtype.itemsize

    # Mask -> additive bias at its natural broadcast shape (never blown up to
    # (B,H,Sq,Sk) in HBM).
    has_mask = mask is not None
    bias = None
    Bm = Hm = Sqm = Skm = 1
    if has_mask:
        mm = jnp.asarray(mask)
        while mm.ndim < 4:
            mm = mm[None]
        Bm, Hm, Sqm, Skm = (int(x) for x in mm.shape)
        assert Bm in (1, B) and Hm in (1, n_heads) and Sqm in (1, Sq) and Skm in (1, Sk), \
            "mask must be broadcastable to (B, H, Sq, Sk)"
        bias = jnp.where(mm == 0, jnp.float32(MASK_VALUE), jnp.float32(0.0))

    if not store_scores:
        # ------------------------------ flash path ------------------------------
        tkv = _pick_seq_tile(Sk, block_kv)
        if has_mask and Skm == Sk and tkv != Sk and tkv % 128 != 0:
            tkv = Sk            # keep the bias block lane-aligned
        n_kv = Sk // tkv

        in_specs = [
            pl.BlockSpec((1, tq, hd), lambda b, hg, qi, kv: (b, qi, hg)),
            pl.BlockSpec((1, tkv, hd), lambda b, hg, qi, kv: (b, kv, hg)),
            pl.BlockSpec((1, tkv, hd), lambda b, hg, qi, kv: (b, kv, hg)),
        ]
        args = [q, k, v]
        bias_bytes = 0
        if has_mask:
            bh = hsub if Hm > 1 else 1
            bq = tq if Sqm > 1 else 1
            bk = tkv if Skm > 1 else 1

            def bias_map(b, hg, qi, kv, _B=Bm, _H=Hm, _Q=Sqm, _K=Skm):
                return (b if _B > 1 else 0, hg if _H > 1 else 0,
                        qi if _Q > 1 else 0, kv if _K > 1 else 0)

            in_specs.append(pl.BlockSpec((1, bh, bq, bk), bias_map))
            args.append(bias)
            bias_bytes = bh * bq * bk * 4

        per_step = (2 * tq * hd + 2 * tkv * hd) * isz + bias_bytes \
            + (tq * hd + 2 * tq * hsub) * 4 + tq * tkv * 4

        kernel = _make_flash_attn_kernel(hsub, d_k, has_mask, Hm > 1)
        ctx = pl.pallas_call(
            kernel,
            out_shape=jax.ShapeDtypeStruct((B, Sq, D), q.dtype),
            grid=(B, n_hg, Sq // tq, n_kv),
            in_specs=in_specs,
            out_specs=pl.BlockSpec((1, tq, hd), lambda b, hg, qi, kv: (b, qi, hg)),
            scratch_shapes=[
                pltpu.VMEM((tq, hsub), jnp.float32),    # running max
                pltpu.VMEM((tq, hsub), jnp.float32),    # running denom
                pltpu.VMEM((tq, hd), jnp.float32),      # running ctx accumulator
            ],
            compiler_params=pltpu.CompilerParams(
                dimension_semantics=("parallel", "parallel", "parallel", "arbitrary"),
                vmem_limit_bytes=_vmem_limit(per_step),
            ),
        )(*args)
        return ctx, None

    # ------------------------- score-keeping path ----------------------------
    sdtype = scores_dtype or q.dtype
    in_specs = [
        pl.BlockSpec((1, tq, hd), lambda b, hg, qi: (b, qi, hg)),
        pl.BlockSpec((1, Sk, hd), lambda b, hg, qi: (b, 0, hg)),     # K resident over qi
        pl.BlockSpec((1, Sk, hd), lambda b, hg, qi: (b, 0, hg)),     # V resident over qi
    ]
    args = [q, k, v]
    bias_bytes = 0
    if has_mask:
        bh = hsub if Hm > 1 else 1
        bq = tq if Sqm > 1 else 1
        bk = Sk if Skm > 1 else 1

        def bias_map(b, hg, qi, _B=Bm, _H=Hm, _Q=Sqm):
            return (b if _B > 1 else 0, hg if _H > 1 else 0, qi if _Q > 1 else 0, 0)

        in_specs.append(pl.BlockSpec((1, bh, bq, bk), bias_map))
        args.append(bias)
        bias_bytes = bh * bq * bk * 4

    per_step = (2 * tq * hd + 2 * Sk * hd) * isz + bias_bytes \
        + tq * hsub * Sk * (jnp.dtype(sdtype).itemsize + 4) + tq * hd * 4

    kernel = _make_scores_attn_kernel(hsub, d_k, has_mask, Hm > 1)
    ctx, scores = pl.pallas_call(
        kernel,
        out_shape=(jax.ShapeDtypeStruct((B, Sq, D), q.dtype),
                   jax.ShapeDtypeStruct((B, n_heads, Sq, Sk), sdtype)),
        grid=(B, n_hg, Sq // tq),
        in_specs=in_specs,
        out_specs=(pl.BlockSpec((1, tq, hd), lambda b, hg, qi: (b, qi, hg)),
                   pl.BlockSpec((1, hsub, tq, Sk), lambda b, hg, qi: (b, hg, qi, 0))),
        compiler_params=pltpu.CompilerParams(
            dimension_semantics=("parallel", "parallel", "parallel"),
            vmem_limit_bytes=_vmem_limit(per_step),
        ),
    )(*args)
    return ctx, scores


# ----------------------------------------------------------------------------
# Module
# ----------------------------------------------------------------------------
class MultiheadAttentionPallas:
    """Pallas re-implementation of the PyTorch MultiheadAttention forward."""

    MASK_VALUE = MASK_VALUE

    def __init__(self, d_model, h, dropout, key, param_dtype=jnp.float32,
                 store_attention_scores=False):
        assert d_model % h == 0, "d_model must be divisible by h"
        self.d_model = d_model
        self.h = h
        self.d_k = d_model // h
        self.dropout = dropout                     # never applied in forward (matches reference)
        self.attention_scores = None
        # Default OFF for performance: the (B,H,Sq,Sk) writeback is pure HBM cost.
        # Set True to reproduce the reference module's attention_scores side effect.
        self.store_attention_scores = store_attention_scores

        # nn.Linear-style init: U(-1/sqrt(fan_in), 1/sqrt(fan_in)).
        # Weights stored pre-transposed as (D_in, D_out).
        # For v6e/v7x, pass param_dtype=jnp.bfloat16 (and bf16 activations) to
        # run the MXU at full rate with f32 accumulation.
        bound = 1.0 / (d_model ** 0.5)
        keys = jax.random.split(key, 8)

        def mk_w(kk):
            return jax.random.uniform(kk, (d_model, d_model), jnp.float32,
                                      -bound, bound).astype(param_dtype)

        def mk_b(kk):
            return jax.random.uniform(kk, (d_model,), jnp.float32,
                                      -bound, bound).astype(param_dtype)

        self.w_q, self.b_q = mk_w(keys[0]), mk_b(keys[1])
        self.w_k, self.b_k = mk_w(keys[2]), mk_b(keys[3])
        self.w_v, self.b_v = mk_w(keys[4]), mk_b(keys[5])
        self.w_o, self.b_o = mk_w(keys[6]), mk_b(keys[7])

    @classmethod
    def from_params(cls, d_model, h, dropout, key):
        assert d_model % h == 0, "d_model must be divisible by h"
        return cls(d_model, h, dropout, key)

    def __call__(self, query, key, value, mask=None):
        B, Sq, D = query.shape
        Sk = key.shape[1]

        if (query is key) and (key is value):
            # Self-attention: fused QKV projection, activation read from HBM once.
            q2, k2, v2 = pallas_qkv_linear(query.reshape(B * Sq, D),
                                           self.w_q, self.w_k, self.w_v,
                                           self.b_q, self.b_k, self.b_v)
            Skk = Sq
        else:
            q2 = pallas_linear(query.reshape(B * Sq, D), self.w_q, self.b_q)
            k2 = pallas_linear(key.reshape(B * Sk, D), self.w_k, self.b_k)
            v2 = pallas_linear(value.reshape(B * Sk, D), self.w_v, self.b_v)
            Skk = Sk

        # Heads stay as contiguous d_k column chunks of D: no (B,H,S,d_k)
        # transposes -- the attention kernel indexes head groups via its
        # BlockSpec column index_map and writes ctx back in the same layout.
        qh = q2.reshape(B, Sq, D)
        kh = k2.reshape(B, Skk, D)
        vh = v2.reshape(B, Skk, D)

        ctx, scores = pallas_attention(qh, kh, vh, mask, n_heads=self.h,
                                       store_scores=self.store_attention_scores)
        self.attention_scores = scores

        out = pallas_linear(ctx.reshape(B * Sq, D), self.w_o, self.b_o)
        return out.reshape(B, Sq, D)


# ----------------------------------------------------------------------------
# Reference (plain JAX, mirrors the PyTorch module) for sanity check
# ----------------------------------------------------------------------------
def reference_forward(mha, query, key, value, mask=None):
    B, Sq, D = query.shape
    Sk = key.shape[1]
    H, d_k = mha.h, mha.d_k
    q = query @ mha.w_q + mha.b_q
    k = key @ mha.w_k + mha.b_k
    v = value @ mha.w_v + mha.b_v
    q = q.reshape(B, Sq, H, d_k).transpose(0, 2, 1, 3)
    k = k.reshape(B, Sk, H, d_k).transpose(0, 2, 1, 3)
    v = v.reshape(B, Sk, H, d_k).transpose(0, 2, 1, 3)
    s = jnp.einsum("bhqd,bhkd->bhqk", q, k) / jnp.sqrt(jnp.float32(d_k))
    if mask is not None:
        m = jnp.asarray(mask)
        while m.ndim < 4:
            m = m[None]
        s = jnp.where(jnp.broadcast_to(m, s.shape) == 0, MASK_VALUE, s)
    p = jax.nn.softmax(s, axis=-1)
    ctx = jnp.einsum("bhqk,bhkd->bhqd", p, v)
    x = ctx.transpose(0, 2, 1, 3).reshape(B, Sq, D)
    return x @ mha.w_o + mha.b_o, p


if __name__ == "__main__":
    d_model, h, dropout = 32, 4, 0.0
    B, S = 2, 8

    root = jax.random.PRNGKey(0)
    k_params, k_q, k_k, k_v = jax.random.split(root, 4)

    mha = MultiheadAttentionPallas(d_model, h, dropout, k_params)

    query = jax.random.normal(k_q, (B, S, d_model), jnp.float32)
    key = jax.random.normal(k_k, (B, S, d_model), jnp.float32)
    value = jax.random.normal(k_v, (B, S, d_model), jnp.float32)

    # Causal mask, broadcastable over batch & heads.
    mask = jnp.tril(jnp.ones((1, 1, S, S), jnp.int32))

    # 1) Default fast path (flash KV tiling, no score writeback), distinct q/k/v.
    out = jax.block_until_ready(mha(query, key, value, mask))
    ref_out, ref_p = reference_forward(mha, query, key, value, mask)
    assert out.shape == (B, S, d_model)
    assert mha.attention_scores is None
    assert jnp.allclose(out, ref_out, atol=2e-3, rtol=2e-3), "flash output mismatch"

    # 2) Self-attention fused-QKV path, no mask.
    out2 = jax.block_until_ready(mha(query, query, query, None))
    ref2, _ = reference_forward(mha, query, query, query, None)
    assert jnp.allclose(out2, ref2, atol=2e-3, rtol=2e-3), "self-attn mismatch"

    # 3) Score-keeping path (matches the reference module's attention_scores).
    mha.store_attention_scores = True
    out3 = jax.block_until_ready(mha(query, key, value, mask))
    assert mha.attention_scores is not None
    assert mha.attention_scores.shape == (B, h, S, S)
    assert jnp.allclose(out3, ref_out, atol=2e-3, rtol=2e-3), "scores-path output mismatch"
    assert jnp.allclose(mha.attention_scores, ref_p, atol=2e-3, rtol=2e-3), "scores mismatch"

    print("KERNEL_OK")
</pallas_src>

<mosaic_0001>
module attributes {stable_mosaic.version = 11 : i64} {
  func.func @_linear_kernel(%arg0: i32, %arg1: i32, %arg2: memref<16x32xf32, #tpu.memory_space<vmem>>, %arg3: memref<32x32xf32, #tpu.memory_space<vmem>>, %arg4: memref<1x32xf32, #tpu.memory_space<vmem>>, %arg5: memref<16x32xf32, #tpu.memory_space<vmem>>) attributes {dimension_semantics = [#tpu.dimension_semantics<parallel>, #tpu.dimension_semantics<parallel>], iteration_bounds = array<i64: 1, 1>, scalar_prefetch = 0 : i64, scratch_operands = 0 : i64, tpu.core_type = #tpu.core_type<tc>, window_params = [{transform_indices = @transform_0, window_bounds = array<i64: 16, 32>}, {transform_indices = @transform_1, window_bounds = array<i64: 32, 32>}, {transform_indices = @transform_2, window_bounds = array<i64: 1, 32>}, {transform_indices = @transform_3, window_bounds = array<i64: 16, 32>}]} {
    %c0 = arith.constant 0 : index
    %c0_0 = arith.constant 0 : index
    %0 = vector.load %arg2[%c0, %c0_0] : memref<16x32xf32, #tpu.memory_space<vmem>>, vector<16x32xf32>
    %c0_1 = arith.constant 0 : index
    %c0_2 = arith.constant 0 : index
    %1 = vector.load %arg3[%c0_1, %c0_2] : memref<32x32xf32, #tpu.memory_space<vmem>>, vector<32x32xf32>
    %cst = arith.constant dense<0.000000e+00> : vector<16x32xf32>
    %2 = tpu.matmul %0, %1, %cst {dimension_numbers = #tpu.dot_dimension_numbers<[1], [0], [0], [1], [0, 0, 1, 1], [], []>} : vector<16x32xf32>, vector<32x32xf32>, vector<16x32xf32> -> vector<16x32xf32>
    %c0_3 = arith.constant 0 : index
    %c0_4 = arith.constant 0 : index
    %3 = vector.load %arg4[%c0_3, %c0_4] : memref<1x32xf32, #tpu.memory_space<vmem>>, vector<1x32xf32>
    %4 = vector.broadcast %3 : vector<1x32xf32> to vector<16x32xf32>
    %5 = arith.addf %2, %4 : vector<16x32xf32>
    %c0_5 = arith.constant 0 : index
    %c0_6 = arith.constant 0 : index
    %6 = vector.load %arg5[%c0_5, %c0_6] : memref<16x32xf32, #tpu.memory_space<vmem>>, vector<16x32xf32>
    tpu.vector_store %arg5[%c0_5, %c0_6], %5 {strides = array<i32>} : memref<16x32xf32, #tpu.memory_space<vmem>>, vector<16x32xf32>,
    return
  }
  func.func @transform_0(%arg0: i32, %arg1: i32) -> (i32, i32) {
    %c0_i32 = arith.constant 0 : i32
    %c0_i32_0 = arith.constant 0 : i32
    return %arg0, %c0_i32 : i32, i32
  }
  func.func @transform_1(%arg0: i32, %arg1: i32) -> (i32, i32) {
    %c0_i32 = arith.constant 0 : i32
    %c0_i32_0 = arith.constant 0 : i32
    return %c0_i32, %arg1 : i32, i32
  }
  func.func @transform_2(%arg0: i32, %arg1: i32) -> (i32, i32) {
    %c0_i32 = arith.constant 0 : i32
    %c0_i32_0 = arith.constant 0 : i32
    return %c0_i32, %arg1 : i32, i32
  }
  func.func @transform_3(%arg0: i32, %arg1: i32) -> (i32, i32) {
    %c0_i32 = arith.constant 0 : i32
    return %arg0, %arg1 : i32, i32
  }
}

</mosaic_0001>

<llo_original>
// kernel: tpu_custom_call.1
$region0: #{tpu_custom_call.1}
  #allocation0 [shape = 'u32[]', space=smem, size = 0x4, offset = 0x4, fixed_abs, tag = 'smem constant byte address 0x4 - core index']
  #allocation1 [shape = 'u32[144,128]{1,0:T(1,128)}', space=vmem, size = 0x12000, scoped, tag = 'internal scratch']
  %s0 = inlined_call_operand.hbm [shape: f32[16,32], index: 0, kind: input, shape index: {}]
  %s1 = inlined_call_operand.hbm [shape: f32[32,32], index: 1, kind: input, shape index: {}]
  %s2 = inlined_call_operand.vmem [shape: f32[1,32], index: 2, kind: input, shape index: {}]
  %s3 = inlined_call_operand.hbm [shape: f32[16,32], index: 3, kind: output, shape index: {}]
  %s4 = sld [smem:[#allocation0]]
  $region30: #{tpu_custom_call.1} parent=0
    _
  %s6 = ssub.s32 1, %s4
  %s7 = scalar_select 0, %s6, %s4
  $region1: #{tpu_custom_call.1} parent=0
    #allocation2 [shape = 'u8[8192]{0}', space=vmem, size = 0x2000, scoped, tag = 'input window, operand 0, single buffered']
    #allocation3 [shape = 's32[1]{0}', space=sflag, size = 0x4, scoped, tag = 'scoped memory for tpu_custom_call.1']
    #allocation4 [shape = 's32[1]{0}', space=sflag, size = 0x4, scoped, tag = 'scoped memory for tpu_custom_call.1']
    #allocation5 [shape = 'u8[16384]{0}', space=vmem, size = 0x4000, scoped, tag = 'input window, operand 1, single buffered']
    #allocation6 [shape = 's32[1]{0}', space=sflag, size = 0x4, scoped, tag = 'scoped memory for tpu_custom_call.1']
    #allocation7 [shape = 'u8[8192]{0}', space=vmem, size = 0x2000, scoped, tag = 'output window, operand 0, single buffered']
    %8 = vsyncpa [#allocation3], 0
    %9 = vsyncpa [#allocation6], 0
    %10 = vsyncpa [#allocation4], 0
    // Predicated region
    $region2: #{tpu_custom_call.1} parent=1 // pred_check
      _
    $region3: #{tpu_custom_call.1} parent=1 // pred_check_branch
      %12 = sbr.rel (0) target = $region5
    $region4: #{tpu_custom_call.1} parent=1 // pred_region
      %s14 = ssub.s32 256, 256
      %15 = vsyncadd [#allocation3], %s14
      %s16 = sshll.u32 [#allocation2], 4
      %s17 = int_to_ptr.vmem [resolvable:$true] %s16
      %22 = dma.hbm_to_vmem [thread:$0]  %s0, 256, %s17, [#allocation3], 128, 128, 8
    $region5: #{tpu_custom_call.1} parent=1 // pred_fallthru
      _
    // Predicated region
    $region6: #{tpu_custom_call.1} parent=1 // pred_check
      _
    $region7: #{tpu_custom_call.1} parent=1 // pred_check_branch
      %24 = sbr.rel (0) target = $region9
    $region8: #{tpu_custom_call.1} parent=1 // pred_region
      %s26 = ssub.s32 512, 512
      %27 = vsyncadd [#allocation6], %s26
      %s28 = sshll.u32 [#allocation5], 4
      %s29 = int_to_ptr.vmem [resolvable:$true] %s28
      %34 = dma.hbm_to_vmem [thread:$0]  %s1, 512, %s29, [#allocation6], 128, 128, 8
    $region9: #{tpu_custom_call.1} parent=1 // pred_fallthru
      _
    // Predicated region
    $region10: #{tpu_custom_call.1} parent=1 // pred_check
      _
    $region11: #{tpu_custom_call.1} parent=1 // pred_check_branch
      %36 = sbr.rel (0) target = $region13
    $region12: #{tpu_custom_call.1} parent=1 // pred_region
      _
    $region13: #{tpu_custom_call.1} parent=1 // pred_fallthru
      _
    // Predicated region
    $region14: #{tpu_custom_call.1} parent=1 // pred_check
      _
    $region15: #{tpu_custom_call.1} parent=1 // pred_check_branch
      %38 = sbr.rel (0) target = $region17
    $region16: #{tpu_custom_call.1} parent=1 // pred_region
      %39 = dma.done [#allocation3], 256
    $region17: #{tpu_custom_call.1} parent=1 // pred_fallthru
      _
    // Predicated region
    $region18: #{tpu_custom_call.1} parent=1 // pred_check
      _
    $region19: #{tpu_custom_call.1} parent=1 // pred_check_branch
      %41 = sbr.rel (0) target = $region21
    $region20: #{tpu_custom_call.1} parent=1 // pred_region
      %42 = dma.done [#allocation6], 512
    $region21: #{tpu_custom_call.1} parent=1 // pred_fallthru
      _
    %v43 = vld [vmem:[#allocation2] sm:$0xff]
    %v44 = vld [vmem:[#allocation2 + $0x8] sm:$0xff]
    %v45 = vld [vmem:[#allocation5] sm:$0xff]
    %v46 = vld [vmem:[#allocation5 + $0x8] sm:$0xff]
    %v47 = vld [vmem:[#allocation5 + $0x10] sm:$0xff]
    %v48 = vld [vmem:[#allocation5 + $0x18] sm:$0xff]
    %v49 = vld [vmem:[%s2] sm:$0x1]
    %v51 = vlaneseq
    %v52 = vshrl.u32 %v51, 7
    %v53 = vsub.s32 0, %v52
    %v54 = vrot.slane %v49, %v53
    %vm56 = vcmask 261120
    %v58 = vsel %vm56, %v43, 0
    %v61 = vsel %vm56, %v44, 0
    %63 = vmatprep.subr.mxu0 0.0
    %64 = vmatpush1.msra.mxu0 0.0
    %65 = vmatprep.subr.mxu0 0.0
    %66 = vmatpush1.msra.mxu0 0.0
    %67 = vmatprep.subr.mxu0 0.0
    %68 = vmatpush1.msra.mxu0 0.0
    %69 = vmatprep.subr.mxu0 0.0
    %70 = vmatpush1.msra.mxu0 0.0
    %71 = vmatprep.subr.mxu0 0.0
    %72 = vmatpush1.msra.mxu0 0.0
    %73 = vmatprep.subr.mxu0 0.0
    %74 = vmatpush1.msra.mxu0 0.0
    %75 = vmatprep.subr.mxu0 0.0
    %76 = vmatpush1.msra.mxu0 0.0
    %77 = vmatprep.subr.mxu0 0.0
    %78 = vmatpush1.msra.mxu0 0.0
    %79 = vmatprep.subr.mxu0 0.0
    %80 = vmatpush1.msra.mxu0 0.0
    %81 = vmatprep.subr.mxu0 0.0
    %82 = vmatpush1.msra.mxu0 0.0
    %83 = vmatprep.subr.mxu0 0.0
    %84 = vmatpush1.msra.mxu0 0.0
    %85 = vmatprep.subr.mxu0 0.0
    %86 = vmatpush1.msra.mxu0 0.0
    %87 = vmatprep.subr.mxu0 0.0
    %88 = vmatpush1.msra.mxu0 %v48
    %89 = vmatprep.subr.mxu0 0.0
    %90 = vmatpush1.msra.mxu0 %v47
    %91 = vmatprep.subr.mxu0 0.0
    %92 = vmatpush1.msra.mxu0 %v46
    %93 = vmatprep.subr.mxu0 0.0
    %94 = vmatpush1.msra.mxu0 %v45
    %95 = vmatprep.subr.mxu0 0.0
    %96 = vmatpush2.msra.mxu0 0.0
    %97 = vmatprep.subr.mxu0 0.0
    %98 = vmatpush2.msra.mxu0 0.0
    %99 = vmatprep.subr.mxu0 0.0
    %100 = vmatpush2.msra.mxu0 0.0
    %101 = vmatprep.subr.mxu0 0.0
    %102 = vmatpush2.msra.mxu0 0.0
    %103 = vmatprep.subr.mxu0 0.0
    %104 = vmatpush2.msra.mxu0 0.0
    %105 = vmatprep.subr.mxu0 0.0
    %106 = vmatpush2.msra.mxu0 0.0
    %107 = vmatprep.subr.mxu0 0.0
    %108 = vmatpush2.msra.mxu0 0.0
    %109 = vmatprep.subr.mxu0 0.0
    %110 = vmatpush2.msra.mxu0 0.0
    %111 = vmatprep.subr.mxu0 0.0
    %112 = vmatpush2.msra.mxu0 0.0
    %113 = vmatprep.subr.mxu0 0.0
    %114 = vmatpush2.msra.mxu0 0.0
    %115 = vmatprep.subr.mxu0 0.0
    %116 = vmatpush2.msra.mxu0 0.0
    %117 = vmatprep.subr.mxu0 0.0
    %118 = vmatpush2.msra.mxu0 0.0
    %119 = vmatprep.subr.mxu0 0.0
    %120 = vmatpush2.msra.mxu0 0.0
    %121 = vmatprep.subr.mxu0 0.0
    %122 = vmatpush2.msra.mxu0 0.0
    %123 = vmatprep.subr.mxu0 0.0
    %124 = vmatpush2.msra.mxu0 0.0
    %125 = vmatprep.subr.mxu0 0.0
    %126 = vmatpush2.msra.mxu0 0.0
    %127 = vmatprep.mubr.f32.mxu0 0.0
    %128 = vmatmul.mubr.f32.gmra.mxu0 %v58
    %v129 = vpop.f32.mrf.mxu0
    %v130 = vadd.f32 %v54, %v129
    %v131 = vpop.f32.mrf.mxu0
    %132 = vmatprep.mubr.f32.mxu0 0.0
    %133 = vmatmul.mubr.f32.gmra.mxu0 %v61
    %v134 = vpop.f32.mrf.mxu0
    %v135 = vadd.f32 %v54, %v134
    %v136 = vpop.f32.mrf.mxu0
    %137 = vdwg.mxu0
    %138 = vst.msk [vmem:[#allocation7] sm:$0xff] %vm56, %v130
    %139 = vst.msk [vmem:[#allocation7 + $0x8] sm:$0xff] %vm56, %v135
    // Predicated region
    $region22: #{tpu_custom_call.1} parent=1 // pred_check
      _
    $region23: #{tpu_custom_call.1} parent=1 // pred_check_branch
      %141 = sbr.rel (0) target = $region25
    $region24: #{tpu_custom_call.1} parent=1 // pred_region
      %s143 = ssub.s32 256, 256
      %144 = vsyncadd [#allocation4], %s143
      %s145 = sshll.u32 [#allocation7], 4
      %s146 = int_to_ptr.vmem [resolvable:$true] %s145
      %151 = dma.vmem_to_hbm [thread:$0]  %s146, 256, %s3, [#allocation4], 128, 128, 8
    $region25: #{tpu_custom_call.1} parent=1 // pred_fallthru
      _
    // Predicated region
    $region26: #{tpu_custom_call.1} parent=1 // pred_check
      _
    $region27: #{tpu_custom_call.1} parent=1 // pred_check_branch
      %153 = sbr.rel (0) target = $region29
    $region28: #{tpu_custom_call.1} parent=1 // pred_region
      %154 = dma.done [#allocation4], 256
    $region29: #{tpu_custom_call.1} parent=1 // pred_fallthru
      _
    %155 = vsyncpa [#allocation3], 1
    %156 = vsyncpa [#allocation6], 1
    %157 = vsyncpa [#allocation4], 1

</llo_original>
